<compile_context>
chip_gen: v7x
topology: tpu7x:2x2x1
jax: 0.10.0
libtpu: 0.0.40
codegen_flags: <defaults>
</compile_context>

<pallas_src>
import functools

import jax
import jax.numpy as jnp
from jax import lax
from jax.experimental import pallas as pl
from jax.experimental.pallas import tpu as pltpu


def _round_up(a: int, b: int) -> int:
    return (a + b - 1) // b * b


def _ce_loss_kernel(x_ref, t_ref, out_ref, *, h, th):
    # x_ref:   (1, C, TH, W) logits block (input dtype, cast to f32 in VMEM)
    # t_ref:   (1, TH, W)    int32 targets
    # out_ref: (1, 1, 8, 128) f32 per-block partial sum (scalar broadcast)
    logits = x_ref[0].astype(jnp.float32)            # (C, TH, W)
    tgt = t_ref[0]                                   # (TH, W)

    # Numerically stable logsumexp over the class axis.  C is a leading dim,
    # so this is elementwise VPU max/add across C vreg slices (no XLU work).
    m = jnp.max(logits, axis=0)                      # (TH, W)
    lse = jnp.log(jnp.sum(jnp.exp(logits - m[None]), axis=0)) + m

    # Gather x[target] via a one-hot select over classes (no data-dependent DMA).
    c_iota = lax.broadcasted_iota(jnp.int32, logits.shape, 0)
    x_t = jnp.sum(jnp.where(c_iota == tgt[None], logits, 0.0), axis=0)

    ce = lse - x_t                                   # (TH, W) per-pixel CE

    if h % th != 0:
        # Last block along H is partially out of bounds; padding values are
        # unspecified, so SELECT them away (multiply would propagate NaN).
        j = pl.program_id(1)
        row = lax.broadcasted_iota(jnp.int32, ce.shape, 0)
        ce = jnp.where(j * th + row < h, ce, 0.0)

    s = jnp.sum(ce)                                  # f32 partial for this block
    out_ref[...] = jnp.broadcast_to(s, out_ref.shape).astype(jnp.float32)


@functools.partial(jax.jit, static_argnames=("block_bytes",))
def ce_loss_weighted(x, target, *, block_bytes=2 * 1024 * 1024):
    """CELossWeighted.forward with weighted=False: mean per-pixel CE over N*H*W.

    x      : [N, C, H, W] float (f32 or bf16) logits
    target : [N, H, W]    integer class indices in [0, C)
    """
    # TODO(synk): weighted=True path (per-image inverse-class-frequency weights
    # via torch.unique) is data-dependent and not implemented here.
    N, C, H, W = x.shape
    itemsize = x.dtype.itemsize
    w_eff = _round_up(W, 128)            # lane-padded width as laid out on TPU

    # Row tile from a bytes budget: ~block_bytes of logits per block.
    th = max(block_bytes // (C * w_eff * itemsize), 8)
    th = (th // 8) * 8                   # multiple of 8 sublanes
    if th >= H:
        th = H                           # full-H block is always legal
    n_th = pl.cdiv(H, th)

    # VMEM estimate: double-buffered input blocks + f32 temporaries + output.
    x_blk = C * th * w_eff * itemsize
    f32_blk = C * th * w_eff * 4
    t_blk = th * w_eff * 4
    vmem_est = 2 * (x_blk + t_blk) + 4 * f32_blk + 2 * 8 * 128 * 4
    vmem_limit = int(min(max(2 * vmem_est, 16 * 1024 * 1024), 48 * 1024 * 1024))

    kernel = functools.partial(_ce_loss_kernel, h=H, th=th)
    partials = pl.pallas_call(
        kernel,
        out_shape=jax.ShapeDtypeStruct((N, n_th, 8, 128), jnp.float32),
        grid_spec=pltpu.PrefetchScalarGridSpec(
            num_scalar_prefetch=0,
            grid=(N, n_th),
            in_specs=[
                pl.BlockSpec((1, C, th, W), lambda i, j: (i, 0, j, 0)),
                pl.BlockSpec((1, th, W), lambda i, j: (i, j, 0)),
            ],
            out_specs=pl.BlockSpec((1, 1, 8, 128), lambda i, j: (i, j, 0, 0)),
        ),
        compiler_params=pltpu.CompilerParams(
            dimension_semantics=("parallel", "parallel"),
            vmem_limit_bytes=vmem_limit,
        ),
    )(x, target.astype(jnp.int32))

    # All-ones weight mask  =>  divide by the true pixel count.  Each (8,128)
    # output block holds the same scalar, so picking [0, 0] is exact.
    return jnp.sum(partials[:, :, 0, 0]) / jnp.float32(N * H * W)


def _reference(x, target):
    logits = x.astype(jnp.float32)
    lse = jax.scipy.special.logsumexp(logits, axis=1)                    # (N,H,W)
    x_t = jnp.take_along_axis(
        logits, target[:, None].astype(jnp.int32), axis=1)[:, 0]         # (N,H,W)
    temp = lse - x_t
    w = jnp.ones_like(temp)
    return jnp.sum(temp * w) / jnp.sum(w)


if __name__ == "__main__":
    key = jax.random.PRNGKey(0)
    k1, k2 = jax.random.split(key)
    N, C, H, W = 2, 4, 16, 16
    x = jax.random.normal(k1, (N, C, H, W), dtype=jnp.float32)
    target = jax.random.randint(k2, (N, H, W), 0, C, dtype=jnp.int32)

    loss = jax.block_until_ready(ce_loss_weighted(x, target))
    ref = _reference(x, target)

    assert jnp.allclose(loss, ref, rtol=1e-5, atol=1e-6), (loss, ref)
    print("KERNEL_OK")
</pallas_src>

<mosaic_0001>
module attributes {stable_mosaic.version = 11 : i64} {
  func.func @_ce_loss_kernel(%arg0: i32, %arg1: i32, %arg2: memref<1x4x16x16xf32, #tpu.memory_space<vmem>>, %arg3: memref<1x16x16xi32, #tpu.memory_space<vmem>>, %arg4: memref<1x1x8x128xf32, #tpu.memory_space<vmem>>) attributes {dimension_semantics = [#tpu.dimension_semantics<parallel>, #tpu.dimension_semantics<parallel>], iteration_bounds = array<i64: 2, 1>, scalar_prefetch = 0 : i64, scratch_operands = 0 : i64, tpu.core_type = #tpu.core_type<tc>, window_params = [{transform_indices = @transform_0, window_bounds = array<i64: 1, 4, 16, 16>}, {transform_indices = @transform_1, window_bounds = array<i64: 1, 16, 16>}, {transform_indices = @transform_2, window_bounds = array<i64: 1, 1, 8, 128>}]} {
    %c0 = arith.constant 0 : index
    %c0_0 = arith.constant 0 : index
    %c0_1 = arith.constant 0 : index
    %c0_2 = arith.constant 0 : index
    %0 = vector.load %arg2[%c0, %c0_0, %c0_1, %c0_2] : memref<1x4x16x16xf32, #tpu.memory_space<vmem>>, vector<1x4x16x16xf32>
    %1 = vector.shape_cast %0 : vector<1x4x16x16xf32> to vector<4x16x16xf32>
    %c0_3 = arith.constant 0 : index
    %c0_4 = arith.constant 0 : index
    %c0_5 = arith.constant 0 : index
    %2 = vector.load %arg3[%c0_3, %c0_4, %c0_5] : memref<1x16x16xi32, #tpu.memory_space<vmem>>, vector<1x16x16xi32>
    %3 = vector.shape_cast %2 : vector<1x16x16xi32> to vector<16x16xi32>
    %cst = arith.constant dense<0xFF800000> : vector<16x16xf32>
    %4 = vector.multi_reduction <maximumf>, %1, %cst [0] : vector<4x16x16xf32> to vector<16x16xf32>
    %5 = vector.shape_cast %4 : vector<16x16xf32> to vector<1x16x16xf32>
    %6 = vector.broadcast %5 : vector<1x16x16xf32> to vector<4x16x16xf32>
    %7 = arith.subf %1, %6 : vector<4x16x16xf32>
    %8 = math.exp %7 : vector<4x16x16xf32>
    %cst_6 = arith.constant dense<0.000000e+00> : vector<16x16xf32>
    %9 = vector.multi_reduction <add>, %8, %cst_6 [0] : vector<4x16x16xf32> to vector<16x16xf32>
    %10 = math.log %9 : vector<16x16xf32>
    %11 = arith.addf %10, %4 : vector<16x16xf32>
    %12 = tpu.iota {dimensions = array<i32: 0>} : vector<4x16x16xi32>
    %13 = vector.shape_cast %3 : vector<16x16xi32> to vector<1x16x16xi32>
    %14 = vector.broadcast %13 : vector<1x16x16xi32> to vector<4x16x16xi32>
    %15 = arith.cmpi eq, %12, %14 : vector<4x16x16xi32>
    %cst_7 = arith.constant 0.000000e+00 : f32
    %16 = vector.broadcast %cst_7 : f32 to vector<4x16x16xf32>
    %17 = arith.select %15, %1, %16 : vector<4x16x16xi1>, vector<4x16x16xf32>
    %cst_8 = arith.constant dense<0.000000e+00> : vector<16x16xf32>
    %18 = vector.multi_reduction <add>, %17, %cst_8 [0] : vector<4x16x16xf32> to vector<16x16xf32>
    %19 = arith.subf %11, %18 : vector<16x16xf32>
    %20 = vector.shape_cast %19 : vector<16x16xf32> to vector<1x16x16xf32>
    %cst_9 = arith.constant dense<0.000000e+00> : vector<1xf32>
    %21 = vector.multi_reduction <add>, %20, %cst_9 [1, 2] : vector<1x16x16xf32> to vector<1xf32>
    %22 = vector.shape_cast %21 : vector<1xf32> to vector<1x1x1xf32>
    %23 = vector.extract %22[0, 0, 0] : f32 from vector<1x1x1xf32>
    %24 = vector.broadcast %23 : f32 to vector<1x1x8x128xf32>
    %c0_10 = arith.constant 0 : index
    %c0_11 = arith.constant 0 : index
    %c0_12 = arith.constant 0 : index
    %c0_13 = arith.constant 0 : index
    %25 = vector.load %arg4[%c0_10, %c0_11, %c0_12, %c0_13] : memref<1x1x8x128xf32, #tpu.memory_space<vmem>>, vector<1x1x8x128xf32>
    tpu.vector_store %arg4[%c0_10, %c0_11, %c0_12, %c0_13], %24 {strides = array<i32>} : memref<1x1x8x128xf32, #tpu.memory_space<vmem>>, vector<1x1x8x128xf32>,
    return
  }
  func.func @transform_0(%arg0: i32, %arg1: i32) -> (i32, i32, i32, i32) {
    %c0_i32 = arith.constant 0 : i32
    %c0_i32_0 = arith.constant 0 : i32
    %c0_i32_1 = arith.constant 0 : i32
    return %arg0, %c0_i32, %arg1, %c0_i32_0 : i32, i32, i32, i32
  }
  func.func @transform_1(%arg0: i32, %arg1: i32) -> (i32, i32, i32) {
    %c0_i32 = arith.constant 0 : i32
    %c0_i32_0 = arith.constant 0 : i32
    return %arg0, %arg1, %c0_i32 : i32, i32, i32
  }
  func.func @transform_2(%arg0: i32, %arg1: i32) -> (i32, i32, i32, i32) {
    %c0_i32 = arith.constant 0 : i32
    %c0_i32_0 = arith.constant 0 : i32
    %c0_i32_1 = arith.constant 0 : i32
    return %arg0, %arg1, %c0_i32, %c0_i32_0 : i32, i32, i32, i32
  }
}

</mosaic_0001>

<llo_original>
// kernel: ce_loss_weighted.1
$region0: #{ce_loss_weighted.1}
  #allocation0 [shape = 'u32[]', space=smem, size = 0x4, offset = 0x4, fixed_abs, tag = 'smem constant byte address 0x4 - core index']
  #allocation1 [shape = 'u32[144,128]{1,0:T(1,128)}', space=vmem, size = 0x12000, scoped, tag = 'internal scratch']
  %s0 = inlined_call_operand.hbm [shape: f32[2,4,16,16], index: 0, kind: input, shape index: {}]
  %s1 = inlined_call_operand.hbm [shape: s32[2,16,16], index: 1, kind: input, shape index: {}]
  %s2 = inlined_call_operand.vmem [shape: f32[2,1,8,128], index: 2, kind: output, shape index: {}]
  %s3 = sld [smem:[#allocation0]]
  $region49: #{ce_loss_weighted.1} parent=0
    _
  %s5 = ssub.s32 1, %s3
  %s6 = scalar_select 0, %s5, %s3
  $region1: #{ce_loss_weighted.1} parent=0
    #allocation2 [shape = 'u8[65536]{0}', space=vmem, size = 0x10000, scoped, tag = 'input window, operand 0']
    #allocation3 [shape = 's32[2]{0}', space=sflag, size = 0x8, scoped, tag = 'scoped memory for ce_loss_weighted.1']
    #allocation4 [shape = 'u8[16384]{0}', space=vmem, size = 0x4000, scoped, tag = 'input window, operand 1']
    #allocation5 [shape = 's32[2]{0}', space=sflag, size = 0x8, scoped, tag = 'scoped memory for ce_loss_weighted.1']
    %7 = vsyncpa [#allocation3], 0
    %s8 = scalar_lea.sflag [#allocation3], 1
    %9 = vsyncpa %s8, 0
    %10 = vsyncpa [#allocation5], 0
    %s11 = scalar_lea.sflag [#allocation5], 1
    %12 = vsyncpa %s11, 0
    loop: start=0, step=1, limit=4
    $region2: #{ce_loss_weighted.1} parent=1 // loop_pre_header
      _
    $region3: #{ce_loss_weighted.1} parent=1 // loop_header
      %s14 = sphi 0, %s18
      %p15 = scmp.ge.s32.totalorder %s14, 4
      %s21 = sphi 0, %s33
      %s22 = sphi 0, %s29
      %s23 = sphi 0, %s21
      %s24 = sphi 0, %s22
      %s25 = sphi 0, %s23
      %s26 = sphi 0, %s24
      %s38 = sphi 0, %s40
      %s41 = sphi 0, %s38
      %s42 = sphi 0, %s41
      %s58 = sphi 0, %s42
      %s66 = sphi 0, %s68
      %s69 = sphi 0, %s66
      %s70 = sphi 0, %s69
      %s86 = sphi 0, %s70
      %s94 = sphi 0, %s96
      %s97 = sphi 0, %s94
      %s98 = sphi 0, %s97
      %s114 = sphi 0, %s98
    $region4: #{ce_loss_weighted.1} parent=1 // loop_header_branch
      %17 = sbr.rel (%p15) target = $region8
    $region5: #{ce_loss_weighted.1} parent=1 // loop_body
      %s19 = ssub.s32 %s14, 1
      %s20 = ssub.s32 %s14, 2
      %s27 = sadd.s32 1, %s22
      %p28 = scmp.ge.s32.totalorder %s27, 1
      %s29 = scalar_select %p28, 0, %s27
      %s30 = sadd.s32 1, %s21
      %s31 = scalar_select %p28, %s30, %s21
      %p32 = scmp.ge.s32.totalorder %s31, 2
      %s33 = scalar_select %p32, 0, %s31
      %s34 = ssub.s32 %s21, %s33
      %s35 = ssub.s32 %s22, %s29
      %s36 = sor.u32 %s34, %s35
      %p37 = scmp.eq.s32.totalorder %s36, 0
      %s39 = sadd.s32 %s38, 1
      %s40 = scalar_select %p37, %s38, %s39
      %p43 = pneg %p37
      %p44 = scmp.eq.s32.totalorder %s14, 1
      %p45 = por %p43, %p44
      %p46 = scmp.ne.s32.totalorder %s38, %s41
      %p47 = scmp.eq.s32.totalorder %s14, 0
      %p48 = por %p46, %p47
      %p49 = scmp.ne.s32.totalorder %s38, %s41
      %p50 = scmp.eq.s32.totalorder %s19, 1
      %p51 = por %p49, %p50
      %p52 = scmp.ne.s32.totalorder %s41, %s42
      %p53 = scmp.eq.s32.totalorder %s19, 0
      %p54 = por %p52, %p53
      %p55 = scmp.ne.s32.totalorder %s41, %s42
      %p56 = scmp.eq.s32.totalorder %s20, 1
      %p57 = por %p55, %p56
      %p59 = scmp.ne.s32.totalorder %s42, %s58
      %p60 = scmp.eq.s32.totalorder %s20, 0
      %p61 = por %p59, %p60
      %s62 = ssub.s32 %s21, %s33
      %s63 = ssub.s32 %s22, %s29
      %s64 = sor.u32 %s62, %s63
      %p65 = scmp.eq.s32.totalorder %s64, 0
      %s67 = sadd.s32 %s66, 1
      %s68 = scalar_select %p65, %s66, %s67
      %p71 = pneg %p65
      %p72 = scmp.eq.s32.totalorder %s14, 1
      %p73 = por %p71, %p72
      %p74 = scmp.ne.s32.totalorder %s66, %s69
      %p75 = scmp.eq.s32.totalorder %s14, 0
      %p76 = por %p74, %p75
      %p77 = scmp.ne.s32.totalorder %s66, %s69
      %p78 = scmp.eq.s32.totalorder %s19, 1
      %p79 = por %p77, %p78
      %p80 = scmp.ne.s32.totalorder %s69, %s70
      %p81 = scmp.eq.s32.totalorder %s19, 0
      %p82 = por %p80, %p81
      %p83 = scmp.ne.s32.totalorder %s69, %s70
      %p84 = scmp.eq.s32.totalorder %s20, 1
      %p85 = por %p83, %p84
      %p87 = scmp.ne.s32.totalorder %s70, %s86
      %p88 = scmp.eq.s32.totalorder %s20, 0
      %p89 = por %p87, %p88
      %s90 = ssub.s32 %s21, %s33
      %s91 = ssub.s32 %s22, %s29
      %s92 = sor.u32 %s90, %s91
      %p93 = scmp.eq.s32.totalorder %s92, 0
      %s95 = sadd.s32 %s94, 1
      %s96 = scalar_select %p93, %s94, %s95
      %p99 = pneg %p93
      %p100 = scmp.eq.s32.totalorder %s14, 1
      %p101 = por %p99, %p100
      %p102 = scmp.ne.s32.totalorder %s94, %s97
      %p103 = scmp.eq.s32.totalorder %s14, 0
      %p104 = por %p102, %p103
      %p105 = scmp.ne.s32.totalorder %s94, %s97
      %p106 = scmp.eq.s32.totalorder %s19, 1
      %p107 = por %p105, %p106
      %p108 = scmp.ne.s32.totalorder %s97, %s98
      %p109 = scmp.eq.s32.totalorder %s19, 0
      %p110 = por %p108, %p109
      %p111 = scmp.ne.s32.totalorder %s97, %s98
      %p112 = scmp.eq.s32.totalorder %s20, 1
      %p113 = por %p111, %p112
      %p115 = scmp.ne.s32.totalorder %s98, %s114
      %p116 = scmp.eq.s32.totalorder %s20, 0
      %p117 = por %p115, %p116
      %p118 = scmp.le.s32.totalorder 1, %s14
      %p119 = scmp.lt.s32.totalorder %s14, 3
      %p120 = pnand %p118, %p119
      %p121 = pneg %p120
      // Predicated region
      $region9: #{ce_loss_weighted.1} parent=5 // pred_check
        _
      $region10: #{ce_loss_weighted.1} parent=5 // pred_check_branch
        %123 = sbr.rel (%p120) target = $region12
      $region11: #{ce_loss_weighted.1} parent=5 // pred_region
        %s124 = ssub.s32 %s14, 1
      $region12: #{ce_loss_weighted.1} parent=5 // pred_fallthru
        _
      %p125 = scmp.lt.s32.totalorder %s14, 2
      // Predicated region
      $region13: #{ce_loss_weighted.1} parent=5 // pred_check
        %p126 = pneg %p125
      $region14: #{ce_loss_weighted.1} parent=5 // pred_check_branch
        %128 = sbr.rel (%p126) target = $region16
      $region15: #{ce_loss_weighted.1} parent=5 // pred_region
        // Predicated region
        $region17: #{ce_loss_weighted.1} parent=15 // pred_check
          %p129 = pneg %p48
        $region18: #{ce_loss_weighted.1} parent=15 // pred_check_branch
          %131 = sbr.rel (%p129) target = $region20
        $region19: #{ce_loss_weighted.1} parent=15 // pred_region
          %s132 = sand.u32 %s38, 1
          %s133 = scalar_lea.sflag [#allocation3], %s132
          %s134 = sand.u32 %s38, 1
          %s135 = smul.addr %s134, 64
          %s136 = scalar_lea.vmem [#allocation2], %s135
          %s137 = smul.u32 2, %s22
          %s139 = ssub.s32 1024, 1024
          %140 = vsyncadd %s133, %s139
          %s141 = smul.addr %s21, 8
          %s142 = sadd.s32 %s137, %s141
          %s143 = smul.addr %s142, 128
          %s144 = scalar_lea.hbm %s0, %s143
          %s145 = sshll.u32 %s136, 4
          %s146 = int_to_ptr.vmem [resolvable:$true] %s145
          %151 = dma.hbm_to_vmem [thread:$0]  %s144, 1024, %s146, %s133, 128, 128, 8
        $region20: #{ce_loss_weighted.1} parent=15 // pred_fallthru
          _
        // Predicated region
        $region21: #{ce_loss_weighted.1} parent=15 // pred_check
          %p152 = pneg %p76
        $region22: #{ce_loss_weighted.1} parent=15 // pred_check_branch
          %154 = sbr.rel (%p152) target = $region24
        $region23: #{ce_loss_weighted.1} parent=15 // pred_region
          %s155 = sand.u32 %s66, 1
          %s156 = scalar_lea.sflag [#allocation5], %s155
          %s157 = sand.u32 %s66, 1
          %s158 = smul.addr %s157, 16
          %s159 = scalar_lea.vmem [#allocation4], %s158
          %s160 = smul.u32 2, %s22
          %s162 = ssub.s32 256, 256
          %163 = vsyncadd %s156, %s162
          %s164 = smul.addr %s21, 2
          %s165 = sadd.s32 %s160, %s164
          %s166 = smul.addr %s165, 128
          %s167 = scalar_lea.hbm %s1, %s166
          %s168 = sshll.u32 %s159, 4
          %s169 = int_to_ptr.vmem [resolvable:$true] %s168
          %174 = dma.hbm_to_vmem [thread:$0]  %s167, 256, %s169, %s156, 128, 128, 8
        $region24: #{ce_loss_weighted.1} parent=15 // pred_fallthru
          _
      $region16: #{ce_loss_weighted.1} parent=5 // pred_fallthru
        _
      %p175 = scmp.le.s32.totalorder 1, %s14
      %p176 = scmp.lt.s32.totalorder %s14, 3
      %p177 = pnand %p175, %p176
      %p178 = pneg %p177
      // Predicated region
      $region25: #{ce_loss_weighted.1} parent=5 // pred_check
        _
      $region26: #{ce_loss_weighted.1} parent=5 // pred_check_branch
        %180 = sbr.rel (%p177) target = $region28
      $region27: #{ce_loss_weighted.1} parent=5 // pred_region
        %s181 = ssub.s32 %s14, 1
        %s182 = sand.u32 %s41, 1
        %s183 = scalar_lea.sflag [#allocation3], %s182
        %s184 = sand.u32 %s41, 1
        %s185 = smul.addr %s184, 64
        %s186 = scalar_lea.vmem [#allocation2], %s185
        // Predicated region
        $region29: #{ce_loss_weighted.1} parent=27 // pred_check
          %p187 = pneg %p54
        $region30: #{ce_loss_weighted.1} parent=27 // pred_check_branch
          %189 = sbr.rel (%p187) target = $region32
        $region31: #{ce_loss_weighted.1} parent=27 // pred_region
          %190 = dma.done %s183, 1024
        $region32: #{ce_loss_weighted.1} parent=27 // pred_fallthru
          _
        %s191 = sand.u32 %s69, 1
        %s192 = scalar_lea.sflag [#allocation5], %s191
        %s193 = sand.u32 %s69, 1
        %s194 = smul.addr %s193, 16
        %s195 = scalar_lea.vmem [#allocation4], %s194
        // Predicated region
        $region33: #{ce_loss_weighted.1} parent=27 // pred_check
          %p196 = pneg %p82
        $region34: #{ce_loss_weighted.1} parent=27 // pred_check_branch
          %198 = sbr.rel (%p196) target = $region36
        $region35: #{ce_loss_weighted.1} parent=27 // pred_region
          %199 = dma.done %s192, 256
        $region36: #{ce_loss_weighted.1} parent=27 // pred_fallthru
          _
        %s200 = sand.u32 %s41, 1
        %s201 = scalar_lea.sflag [#allocation3], %s200
        %s202 = sand.u32 %s41, 1
        %s203 = smul.addr %s202, 64
        %s204 = scalar_lea.vmem [#allocation2], %s203
        %p205 = pneg %p54
        %p206 = pneg %p51
        %s207 = sand.u32 %s69, 1
        %s208 = scalar_lea.sflag [#allocation5], %s207
        %s209 = sand.u32 %s69, 1
        %s210 = smul.addr %s209, 16
        %s211 = scalar_lea.vmem [#allocation4], %s210
        %p212 = pneg %p82
        %p213 = pneg %p79
        %p214 = pneg %p110
        %p215 = pneg %p107
        %p216 = scmp.lt.s32.totalorder %s23, 1
        %s217 = scalar_select %p216, %s23, 1
        %p218 = scmp.lt.s32.totalorder %s24, 0
        %s219 = scalar_select %p218, %s24, 0
        %s220 = sadd.s32 %s219, %s217
        %s221 = smul.addr %s220, 8
        %s222 = scalar_lea.vmem %s2, %s221
        %s223 = smul.u32 2, %s24
        %s224 = smul.u32 2, %s24
        %p225 = scmp.lt.s32.totalorder %s23, 1
        %s226 = scalar_select %p225, %s23, 1
        %p227 = scmp.lt.s32.totalorder %s24, 0
        %s228 = scalar_select %p227, %s24, 0
        %s229 = sadd.s32 %s228, %s226
        %s230 = smul.addr %s229, 8
        %s231 = scalar_lea.vmem %s2, %s230
        %v232 = vld [vmem:[%s186] sm:$0xff]
        %v233 = vld [vmem:[%s186 + $0x8] sm:$0xff]
        %v234 = vld [vmem:[%s186 + $0x10] sm:$0xff]
        %v235 = vld [vmem:[%s186 + $0x18] sm:$0xff]
        %v236 = vld [vmem:[%s186 + $0x20] sm:$0xff]
        %v237 = vld [vmem:[%s186 + $0x28] sm:$0xff]
        %v238 = vld [vmem:[%s186 + $0x30] sm:$0xff]
        %v239 = vld [vmem:[%s186 + $0x38] sm:$0xff]
        %v240 = vld [vmem:[%s195] sm:$0xff]
        %v241 = vld [vmem:[%s195 + $0x8] sm:$0xff]
        %vm242 = vcmask 130048
        %v243 = vsel %vm242, %v232, -inf
        %v244 = vsel %vm242, %v234, -inf
        %v245 = vsel %vm242, %v236, -inf
        %v246 = vmax.f32 %v243, %v245
        %v247 = vsel %vm242, %v238, -inf
        %v248 = vmax.f32 %v244, %v247
        %v249 = vmax.f32 %v246, %v248
        %v250 = vsel %vm242, %v233, -inf
        %v251 = vsel %vm242, %v235, -inf
        %v252 = vsel %vm242, %v237, -inf
        %v253 = vmax.f32 %v250, %v252
        %v254 = vsel %vm242, %v239, -inf
        %v255 = vmax.f32 %v251, %v254
        %v256 = vmax.f32 %v253, %v255
        %v257 = vsub.f32 %v232, %v249
        %v258 = vsub.f32 %v233, %v256
        %v259 = vsub.f32 %v234, %v249
        %v260 = vsub.f32 %v235, %v256
        %v261 = vsub.f32 %v236, %v249
        %v262 = vsub.f32 %v237, %v256
        %v263 = vsub.f32 %v238, %v249
        %v264 = vsub.f32 %v239, %v256
        %v265 = vmul.f32 %v257, 1.442695
        %v266 = vpow.pop %v265
        %v267 = vmul.f32 %v258, 1.442695
        %v268 = vpow.pop %v267
        %v269 = vmul.f32 %v259, 1.442695
        %v270 = vpow.pop %v269
        %v271 = vmul.f32 %v260, 1.442695
        %v272 = vpow.pop %v271
        %v273 = vmul.f32 %v261, 1.442695
        %v274 = vpow.pop %v273
        %v275 = vmul.f32 %v262, 1.442695
        %v276 = vpow.pop %v275
        %v277 = vmul.f32 %v263, 1.442695
        %v278 = vpow.pop %v277
        %v279 = vmul.f32 %v264, 1.442695
        %v280 = vpow.pop %v279
        %v281 = vsel %vm242, %v266, 0.0
        %v282 = vsel %vm242, %v270, 0.0
        %v283 = vadd.f32 %v281, %v282
        %v284 = vsel %vm242, %v274, 0.0
        %v285 = vadd.f32 %v283, %v284
        %v286 = vsel %vm242, %v278, 0.0
        %v287 = vadd.f32 %v285, %v286
        %v288 = vsel %vm242, %v268, 0.0
        %v289 = vsel %vm242, %v272, 0.0
        %v290 = vadd.f32 %v288, %v289
        %v291 = vsel %vm242, %v276, 0.0
        %v292 = vadd.f32 %v290, %v291
        %v293 = vsel %vm242, %v280, 0.0
        %v294 = vadd.f32 %v292, %v293
        %v295 = vlog2.pop %v287
        %v296 = vmul.f32 %v295, 0.6931472
        %v297 = vlog2.pop %v294
        %v298 = vmul.f32 %v297, 0.6931472
        %v299 = vadd.f32 %v296, %v249
        %v300 = vadd.f32 %v298, %v256
        %vm301 = vcmp.eq.s32.totalorder %v240, 0
        %vm302 = vcmp.eq.s32.totalorder %v241, 0
        %vm303 = vcmp.eq.s32.totalorder %v240, 1
        %vm304 = vcmp.eq.s32.totalorder %v241, 1
        %vm305 = vcmp.eq.s32.totalorder %v240, 2
        %vm306 = vcmp.eq.s32.totalorder %v241, 2
        %vm307 = vcmp.eq.s32.totalorder %v240, 3
        %vm308 = vcmp.eq.s32.totalorder %v241, 3
        %v309 = vsel %vm301, %v232, 0.0
        %v310 = vsel %vm302, %v233, 0.0
        %v311 = vsel %vm303, %v234, 0.0
        %v312 = vsel %vm304, %v235, 0.0
        %v313 = vsel %vm305, %v236, 0.0
        %v314 = vsel %vm306, %v237, 0.0
        %v315 = vsel %vm307, %v238, 0.0
        %v316 = vsel %vm308, %v239, 0.0
        %v317 = vsel %vm242, %v309, 0.0
        %v318 = vsel %vm242, %v311, 0.0
        %v319 = vadd.f32 %v317, %v318
        %v320 = vsel %vm242, %v313, 0.0
        %v321 = vadd.f32 %v319, %v320
        %v322 = vsel %vm242, %v315, 0.0
        %v323 = vadd.f32 %v321, %v322
        %v324 = vsel %vm242, %v310, 0.0
        %v325 = vsel %vm242, %v312, 0.0
        %v326 = vadd.f32 %v324, %v325
        %v327 = vsel %vm242, %v314, 0.0
        %v328 = vadd.f32 %v326, %v327
        %v329 = vsel %vm242, %v316, 0.0
        %v330 = vadd.f32 %v328, %v329
        %v331 = vsub.f32 %v299, %v323
        %v332 = vsub.f32 %v300, %v330
        %v333 = vsel %vm242, %v331, 0.0
        %v334 = vsel %vm242, %v332, 0.0
        %v335 = vadd.f32 %v333, %v334
        %336 = vadd.xlane.f32.xlu0 %v335
        %v337 = vpop.xlane.xlu0 %336
        %v338 = vrot.slane %v337, 4
        %v339 = vadd.f32 %v337, %v338
        %v340 = vrot.slane %v339, 2
        %v341 = vadd.f32 %v339, %v340
        %v342 = vrot.slane %v341, 1
        %v343 = vadd.f32 %v341, %v342
        %s344 = vtos %v343
        %v345 = vstv %s344
        %346 = vst [vmem:[%s231] sm:$0xff] %v345
        %p347 = scmp.lt.s32.totalorder %s23, 1
        %s348 = scalar_select %p347, %s23, 1
        %p349 = scmp.lt.s32.totalorder %s24, 0
        %s350 = scalar_select %p349, %s24, 0
        %s351 = sadd.s32 %s350, %s348
        %s352 = smul.addr %s351, 8
        %s353 = scalar_lea.vmem %s2, %s352
        // Predicated region
        $region37: #{ce_loss_weighted.1} parent=27 // pred_check
          %p354 = pneg %p107
        $region38: #{ce_loss_weighted.1} parent=27 // pred_check_branch
          %356 = sbr.rel (%p354) target = $region40
        $region39: #{ce_loss_weighted.1} parent=27 // pred_region
          _
        $region40: #{ce_loss_weighted.1} parent=27 // pred_fallthru
          _
      $region28: #{ce_loss_weighted.1} parent=5 // pred_fallthru
        _
      %p357 = scmp.le.s32.totalorder 2, %s14
      // Predicated region
      $region41: #{ce_loss_weighted.1} parent=5 // pred_check
        %p358 = pneg %p357
      $region42: #{ce_loss_weighted.1} parent=5 // pred_check_branch
        %360 = sbr.rel (%p358) target = $region44
      $region43: #{ce_loss_weighted.1} parent=5 // pred_region
        %s361 = ssub.s32 %s14, 2
        // Predicated region
        $region45: #{ce_loss_weighted.1} parent=43 // pred_check
          %p362 = pneg %p113
        $region46: #{ce_loss_weighted.1} parent=43 // pred_check_branch
          %364 = sbr.rel (%p362) target = $region48
        $region47: #{ce_loss_weighted.1} parent=43 // pred_region
          %p365 = scmp.lt.s32.totalorder %s25, 1
          %s366 = scalar_select %p365, %s25, 1
          %p367 = scmp.lt.s32.totalorder %s26, 0
          %s368 = scalar_select %p367, %s26, 0
          %s369 = sadd.s32 %s368, %s366
          %s370 = smul.addr %s369, 8
          %s371 = scalar_lea.vmem %s2, %s370
        $region48: #{ce_loss_weighted.1} parent=43 // pred_fallthru
          _
      $region44: #{ce_loss_weighted.1} parent=5 // pred_fallthru
        _
    $region6: #{ce_loss_weighted.1} parent=1 // loop_footer
      %s18 = sadd.s32 1, %s14
    $region7: #{ce_loss_weighted.1} parent=1 // loop_footer_branch
      %13 = sbr.rel target = $region3
    $region8: #{ce_loss_weighted.1} parent=1 // loop_exit
      _
    %372 = vsyncpa [#allocation3], 1
    %s373 = scalar_lea.sflag [#allocation3], 1
    %374 = vsyncpa %s373, 1
    %375 = vsyncpa [#allocation5], 1
    %s376 = scalar_lea.sflag [#allocation5], 1
    %377 = vsyncpa %s376, 1

</llo_original>
